<compile_context>
chip_gen: v7x
topology: tpu7x:2x2x1
jax: 0.10.0
libtpu: 0.0.40
codegen_flags: <defaults>
</compile_context>

<pallas_src>
import functools

import jax
import jax.numpy as jnp
from jax.experimental import pallas as pl
from jax.experimental.pallas import tpu as pltpu


def _soft_target_kernel(s_ref, t_ref, o_ref, *, inv_T, n_rows, tb, need_mask):
    # (tb, C) tiles of student / teacher logits, cast to f32 in-kernel.
    s = s_ref[...].astype(jnp.float32)
    t = t_ref[...].astype(jnp.float32)

    # Fuse 1/T into the max shift: max(x / T) == max(x) / T for T > 0.
    s_shift = (s - jnp.max(s, axis=1, keepdims=True)) * inv_T
    t_shift = (t - jnp.max(t, axis=1, keepdims=True)) * inv_T

    # Softmax denominators (class axis = lane axis).
    s_sum = jnp.sum(jnp.exp(s_shift), axis=1, keepdims=True)   # (tb, 1)
    t_exp = jnp.exp(t_shift)                                    # (tb, C)
    t_sum = jnp.sum(t_exp, axis=1, keepdims=True)               # (tb, 1)

    # Row-wise KL without materializing log_p_s / log_p_t full tiles:
    #   KL_row = sum_c t_exp * (t_shift - s_shift) / t_sum + log(s_sum) - log(t_sum)
    num = jnp.sum(t_exp * (t_shift - s_shift), axis=1, keepdims=True)
    row_kl = (num * pl.reciprocal(t_sum, approx=False)
              + jnp.log(s_sum) - jnp.log(t_sum))                # (tb, 1)

    if need_mask:
        # Only the trailing rows of the last block can be padding; garbage in
        # those rows never mixes with valid rows, so masking row_kl suffices.
        base = pl.program_id(0) * tb
        rows = jax.lax.broadcasted_iota(jnp.int32, (tb, 1), 0) + base
        row_kl = jnp.where(rows < n_rows, row_kl, 0.0)

    # Per-block partial sum, broadcast over an (8,128)-aligned lane-dense
    # output tile (unmasked store); cross-block reduction happens outside.
    block_sum = jnp.sum(row_kl, keepdims=True)                  # (1, 1)
    o_ref[...] = jnp.broadcast_to(block_sum, (8, 128))


def _hw_budget():
    """(f32 tile-target bytes, batch-tile cap, vmem_limit cap) per TPU generation."""
    try:
        vmem_cap = pltpu.get_tpu_info().vmem_capacity_bytes
    except Exception:
        vmem_cap = 64 * 2**20  # conservative (v7x-like) fallback
    if vmem_cap >= 128 * 2**20:
        # v5e / v6e: 128 MiB VMEM, slower HBM -> big tiles amortize per-step overhead.
        return 6 * 2**20, 8192, 96 * 2**20
    # v7x: 64 MiB VMEM per TensorCore -> keep tiles modest, leave Mosaic headroom.
    return (5 * 2**20) // 2, 2048, 48 * 2**20


def _pick_tb(N, C, tile_target_bytes, tb_cap):
    """Batch tile: ~tile_target bytes of f32 per (tb, C) tile, sublane-aligned."""
    max_rows = max(8, tile_target_bytes // (C * 4))
    tb = min(N, tb_cap, max_rows)
    if tb < N:
        tb = max(8, (tb // 8) * 8)       # sublane alignment when tiling the batch
    # Guarantee >= 2 grid blocks for N >= 16 so a 2-TC chip (v7x) can shard the
    # batch axis across both TensorCores; harmless on 1-TC chips.
    if tb >= N and N >= 16:
        half = (N + 1) // 2
        tb = max(8, ((half + 7) // 8) * 8)
        if tb >= N:                       # ensure it actually splits
            tb = max(8, (N // 2 // 8) * 8)
    return tb
    # TODO(synk): for vocab-scale C, add a class-axis grid dimension with online
    # logsumexp accumulation instead of clamping tb down to 8 rows.


def soft_target_loss(out_s, out_t, T, *, tb=None):
    """Pallas implementation of SoftTarget(T)(out_s, out_t). Returns a scalar."""
    assert out_s.shape == out_t.shape and out_s.ndim == 2
    N, C = out_s.shape
    tile_target, tb_cap, vmem_cap_limit = _hw_budget()
    if tb is None:
        tb = _pick_tb(N, C, tile_target, tb_cap)
    num_blocks = pl.cdiv(N, tb)
    need_mask = (N % tb) != 0

    kernel = functools.partial(
        _soft_target_kernel, inv_T=1.0 / float(T), n_rows=N, tb=tb,
        need_mask=need_mask)

    # VMEM budget: 2 inputs x 2 pipeline buffers (native dtype) + ~7 live
    # (tb, C) f32 temporaries after the algebraic refactor + headroom,
    # capped per-generation (48 MiB on v7x's 64 MiB/TC, 96 MiB on v5e/v6e).
    tile_in_bytes = tb * C * out_s.dtype.itemsize
    tile_f32_bytes = tb * C * 4
    vmem_limit = int(min(vmem_cap_limit,
                         max(32 * 2**20,
                             4 * tile_in_bytes + 7 * tile_f32_bytes + (4 << 20))))

    partials = pl.pallas_call(
        kernel,
        out_shape=jax.ShapeDtypeStruct((num_blocks * 8, 128), jnp.float32),
        grid_spec=pltpu.PrefetchScalarGridSpec(
            num_scalar_prefetch=0,
            grid=(num_blocks,),
            in_specs=[
                pl.BlockSpec((tb, C), lambda i: (i, 0)),
                pl.BlockSpec((tb, C), lambda i: (i, 0)),
            ],
            out_specs=pl.BlockSpec((8, 128), lambda i: (i, 0)),
        ),
        compiler_params=pltpu.CompilerParams(
            dimension_semantics=("parallel",),   # batch blocks are independent
            vmem_limit_bytes=vmem_limit,
        ),
    )(out_s, out_t)

    # Each block broadcast its partial across its (8,128) tile; pick one
    # representative per block and finish the reduction + scaling in JAX.
    total = jnp.sum(partials[::8, 0])
    return total * (float(T) * float(T) / N)


def soft_target_loss_ref(out_s, out_t, T):
    """Pure-JAX reference for verification."""
    log_p_s = jax.nn.log_softmax(out_s.astype(jnp.float32) / T, axis=1)
    p_t = jax.nn.softmax(out_t.astype(jnp.float32) / T, axis=1)
    log_p_t = jax.nn.log_softmax(out_t.astype(jnp.float32) / T, axis=1)
    kl = jnp.sum(p_t * (log_p_t - log_p_s)) / out_s.shape[0]
    return kl * T * T


if __name__ == "__main__":
    T = 4.0

    # Primary small test: N=16, C=128, f32 (auto-splits into 2 blocks of 8 rows).
    N, C = 16, 128
    ks, kt = jax.random.split(jax.random.PRNGKey(0))
    out_s = jax.random.normal(ks, (N, C), dtype=jnp.float32) * 3.0
    out_t = jax.random.normal(kt, (N, C), dtype=jnp.float32) * 3.0
    loss = jax.block_until_ready(soft_target_loss(out_s, out_t, T))
    ref = soft_target_loss_ref(out_s, out_t, T)
    assert jnp.allclose(loss, ref, rtol=2e-5, atol=1e-6), (loss, ref)

    # Ragged-batch test: N not a multiple of the tile (cdiv grid + row masking,
    # padded-row garbage discarded by the (tb, 1) select).
    N2 = 12
    ks2, kt2 = jax.random.split(jax.random.PRNGKey(1))
    out_s2 = jax.random.normal(ks2, (N2, C), dtype=jnp.float32) * 2.0
    out_t2 = jax.random.normal(kt2, (N2, C), dtype=jnp.float32) * 2.0
    loss2 = jax.block_until_ready(soft_target_loss(out_s2, out_t2, T, tb=8))
    ref2 = soft_target_loss_ref(out_s2, out_t2, T)
    assert jnp.allclose(loss2, ref2, rtol=2e-5, atol=1e-6), (loss2, ref2)

    # bf16 inputs stream as bf16 (half the HBM bytes); compute stays f32 in-kernel.
    out_s3 = out_s.astype(jnp.bfloat16)
    out_t3 = out_t.astype(jnp.bfloat16)
    loss3 = jax.block_until_ready(soft_target_loss(out_s3, out_t3, T))
    ref3 = soft_target_loss_ref(out_s3, out_t3, T)
    assert jnp.allclose(loss3, ref3, rtol=1e-4, atol=1e-5), (loss3, ref3)

    print("KERNEL_OK")
</pallas_src>

<mosaic_0001>
module attributes {stable_mosaic.version = 11 : i64} {
  func.func @_soft_target_kernel(%arg0: i32, %arg1: memref<8x128xf32, #tpu.memory_space<vmem>>, %arg2: memref<8x128xf32, #tpu.memory_space<vmem>>, %arg3: memref<8x128xf32, #tpu.memory_space<vmem>>) attributes {dimension_semantics = [#tpu.dimension_semantics<parallel>], iteration_bounds = array<i64: 2>, scalar_prefetch = 0 : i64, scratch_operands = 0 : i64, tpu.core_type = #tpu.core_type<tc>, window_params = [{transform_indices = @transform_0, window_bounds = array<i64: 8, 128>}, {transform_indices = @transform_1, window_bounds = array<i64: 8, 128>}, {transform_indices = @transform_2, window_bounds = array<i64: 8, 128>}]} {
    %c0 = arith.constant 0 : index
    %c0_0 = arith.constant 0 : index
    %0 = vector.load %arg1[%c0, %c0_0] : memref<8x128xf32, #tpu.memory_space<vmem>>, vector<8x128xf32>
    %c0_1 = arith.constant 0 : index
    %c0_2 = arith.constant 0 : index
    %1 = vector.load %arg2[%c0_1, %c0_2] : memref<8x128xf32, #tpu.memory_space<vmem>>, vector<8x128xf32>
    %cst = arith.constant dense<0xFF800000> : vector<8xf32>
    %2 = vector.multi_reduction <maximumf>, %0, %cst [1] : vector<8x128xf32> to vector<8xf32>
    %3 = vector.shape_cast %2 : vector<8xf32> to vector<8x1xf32>
    %4 = vector.broadcast %3 : vector<8x1xf32> to vector<8x128xf32>
    %5 = arith.subf %0, %4 : vector<8x128xf32>
    %cst_3 = arith.constant 2.500000e-01 : f32
    %6 = vector.broadcast %cst_3 : f32 to vector<8x128xf32>
    %7 = arith.mulf %5, %6 : vector<8x128xf32>
    %cst_4 = arith.constant dense<0xFF800000> : vector<8xf32>
    %8 = vector.multi_reduction <maximumf>, %1, %cst_4 [1] : vector<8x128xf32> to vector<8xf32>
    %9 = vector.shape_cast %8 : vector<8xf32> to vector<8x1xf32>
    %10 = vector.broadcast %9 : vector<8x1xf32> to vector<8x128xf32>
    %11 = arith.subf %1, %10 : vector<8x128xf32>
    %cst_5 = arith.constant 2.500000e-01 : f32
    %12 = vector.broadcast %cst_5 : f32 to vector<8x128xf32>
    %13 = arith.mulf %11, %12 : vector<8x128xf32>
    %14 = math.exp %7 : vector<8x128xf32>
    %cst_6 = arith.constant dense<0.000000e+00> : vector<8xf32>
    %15 = vector.multi_reduction <add>, %14, %cst_6 [1] : vector<8x128xf32> to vector<8xf32>
    %16 = vector.shape_cast %15 : vector<8xf32> to vector<8x1xf32>
    %17 = math.exp %13 : vector<8x128xf32>
    %cst_7 = arith.constant dense<0.000000e+00> : vector<8xf32>
    %18 = vector.multi_reduction <add>, %17, %cst_7 [1] : vector<8x128xf32> to vector<8xf32>
    %19 = vector.shape_cast %18 : vector<8xf32> to vector<8x1xf32>
    %20 = arith.subf %13, %7 : vector<8x128xf32>
    %21 = arith.mulf %17, %20 : vector<8x128xf32>
    %cst_8 = arith.constant dense<0.000000e+00> : vector<8xf32>
    %22 = vector.multi_reduction <add>, %21, %cst_8 [1] : vector<8x128xf32> to vector<8xf32>
    %23 = vector.shape_cast %22 : vector<8xf32> to vector<8x1xf32>
    %24 = tpu.reciprocal %19 : vector<8x1xf32> -> vector<8x1xf32>
    %25 = arith.mulf %23, %24 : vector<8x1xf32>
    %26 = math.log %16 : vector<8x1xf32>
    %27 = arith.addf %25, %26 : vector<8x1xf32>
    %28 = math.log %19 : vector<8x1xf32>
    %29 = arith.subf %27, %28 : vector<8x1xf32>
    %30 = vector.shape_cast %29 : vector<8x1xf32> to vector<1x8x1xf32>
    %cst_9 = arith.constant dense<0.000000e+00> : vector<1xf32>
    %31 = vector.multi_reduction <add>, %30, %cst_9 [1, 2] : vector<1x8x1xf32> to vector<1xf32>
    %32 = vector.shape_cast %31 : vector<1xf32> to vector<1x1x1xf32>
    %33 = vector.extract %32[0, 0, 0] : f32 from vector<1x1x1xf32>
    %34 = vector.broadcast %33 : f32 to vector<1x1xf32>
    %35 = vector.shape_cast %34 : vector<1x1xf32> to vector<1x1xf32>
    %36 = vector.broadcast %35 : vector<1x1xf32> to vector<8x128xf32>
    %c0_10 = arith.constant 0 : index
    %c0_11 = arith.constant 0 : index
    %37 = vector.load %arg3[%c0_10, %c0_11] : memref<8x128xf32, #tpu.memory_space<vmem>>, vector<8x128xf32>
    tpu.vector_store %arg3[%c0_10, %c0_11], %36 {strides = array<i32>} : memref<8x128xf32, #tpu.memory_space<vmem>>, vector<8x128xf32>,
    return
  }
  func.func @transform_0(%arg0: i32) -> (i32, i32) {
    %c0_i32 = arith.constant 0 : i32
    %c0_i32_0 = arith.constant 0 : i32
    return %arg0, %c0_i32 : i32, i32
  }
  func.func @transform_1(%arg0: i32) -> (i32, i32) {
    %c0_i32 = arith.constant 0 : i32
    %c0_i32_0 = arith.constant 0 : i32
    return %arg0, %c0_i32 : i32, i32
  }
  func.func @transform_2(%arg0: i32) -> (i32, i32) {
    %c0_i32 = arith.constant 0 : i32
    %c0_i32_0 = arith.constant 0 : i32
    return %arg0, %c0_i32 : i32, i32
  }
}

</mosaic_0001>

<llo_original>
// kernel: tpu_custom_call.1
$region0: #{tpu_custom_call.1}
  #allocation0 [shape = 'u32[]', space=smem, size = 0x4, offset = 0x4, fixed_abs, tag = 'smem constant byte address 0x4 - core index']
  #allocation1 [shape = 'u32[144,128]{1,0:T(1,128)}', space=vmem, size = 0x12000, scoped, tag = 'internal scratch']
  %s0 = inlined_call_operand.hbm [shape: f32[16,128], index: 0, kind: input, shape index: {}]
  %s1 = inlined_call_operand.hbm [shape: f32[16,128], index: 1, kind: input, shape index: {}]
  %s2 = inlined_call_operand.hbm [shape: f32[16,128], index: 2, kind: output, shape index: {}]
  %s3 = sld [smem:[#allocation0]]
  $region49: #{tpu_custom_call.1} parent=0
    _
  %s5 = ssub.s32 1, %s3
  %s6 = scalar_select 0, %s5, %s3
  $region1: #{tpu_custom_call.1} parent=0
    #allocation2 [shape = 'u8[8192]{0}', space=vmem, size = 0x2000, scoped, tag = 'input window, operand 0']
    #allocation3 [shape = 's32[2]{0}', space=sflag, size = 0x8, scoped, tag = 'scoped memory for tpu_custom_call.1']
    #allocation4 [shape = 's32[2]{0}', space=sflag, size = 0x8, scoped, tag = 'scoped memory for tpu_custom_call.1']
    #allocation5 [shape = 'u8[8192]{0}', space=vmem, size = 0x2000, scoped, tag = 'input window, operand 1']
    #allocation6 [shape = 's32[2]{0}', space=sflag, size = 0x8, scoped, tag = 'scoped memory for tpu_custom_call.1']
    #allocation7 [shape = 'u8[8192]{0}', space=vmem, size = 0x2000, scoped, tag = 'output window, operand 0']
    %7 = vsyncpa [#allocation3], 0
    %s8 = scalar_lea.sflag [#allocation3], 1
    %9 = vsyncpa %s8, 0
    %10 = vsyncpa [#allocation6], 0
    %s11 = scalar_lea.sflag [#allocation6], 1
    %12 = vsyncpa %s11, 0
    %13 = vsyncpa [#allocation4], 0
    %s14 = scalar_lea.sflag [#allocation4], 1
    %15 = vsyncpa %s14, 0
    loop: start=0, step=1, limit=4
    $region2: #{tpu_custom_call.1} parent=1 // loop_pre_header
      _
    $region3: #{tpu_custom_call.1} parent=1 // loop_header
      %s17 = sphi 0, %s21
      %p18 = scmp.ge.s32.totalorder %s17, 4
      %s27 = sphi 0, %s29
      %s30 = sphi 0, %s27
      %s31 = sphi 0, %s30
      %s47 = sphi 0, %s31
      %s53 = sphi 0, %s55
      %s56 = sphi 0, %s53
      %s57 = sphi 0, %s56
      %s73 = sphi 0, %s57
      %s79 = sphi 0, %s81
      %s82 = sphi 0, %s79
      %s83 = sphi 0, %s82
      %s99 = sphi 0, %s83
    $region4: #{tpu_custom_call.1} parent=1 // loop_header_branch
      %20 = sbr.rel (%p18) target = $region8
    $region5: #{tpu_custom_call.1} parent=1 // loop_body
      %s22 = ssub.s32 %s17, 1
      %s23 = ssub.s32 %s17, 2
      %s24 = sadd.s32 %s17, 1
      %s25 = ssub.s32 %s17, %s24
      %p26 = scmp.eq.s32.totalorder %s25, 0
      %s28 = sadd.s32 %s27, 1
      %s29 = scalar_select %p26, %s27, %s28
      %p32 = pneg %p26
      %p33 = scmp.eq.s32.totalorder %s17, 1
      %p34 = por %p32, %p33
      %p35 = scmp.ne.s32.totalorder %s27, %s30
      %p36 = scmp.eq.s32.totalorder %s17, 0
      %p37 = por %p35, %p36
      %p38 = scmp.ne.s32.totalorder %s27, %s30
      %p39 = scmp.eq.s32.totalorder %s22, 1
      %p40 = por %p38, %p39
      %p41 = scmp.ne.s32.totalorder %s30, %s31
      %p42 = scmp.eq.s32.totalorder %s22, 0
      %p43 = por %p41, %p42
      %p44 = scmp.ne.s32.totalorder %s30, %s31
      %p45 = scmp.eq.s32.totalorder %s23, 1
      %p46 = por %p44, %p45
      %p48 = scmp.ne.s32.totalorder %s31, %s47
      %p49 = scmp.eq.s32.totalorder %s23, 0
      %p50 = por %p48, %p49
      %s51 = ssub.s32 %s17, %s24
      %p52 = scmp.eq.s32.totalorder %s51, 0
      %s54 = sadd.s32 %s53, 1
      %s55 = scalar_select %p52, %s53, %s54
      %p58 = pneg %p52
      %p59 = scmp.eq.s32.totalorder %s17, 1
      %p60 = por %p58, %p59
      %p61 = scmp.ne.s32.totalorder %s53, %s56
      %p62 = scmp.eq.s32.totalorder %s17, 0
      %p63 = por %p61, %p62
      %p64 = scmp.ne.s32.totalorder %s53, %s56
      %p65 = scmp.eq.s32.totalorder %s22, 1
      %p66 = por %p64, %p65
      %p67 = scmp.ne.s32.totalorder %s56, %s57
      %p68 = scmp.eq.s32.totalorder %s22, 0
      %p69 = por %p67, %p68
      %p70 = scmp.ne.s32.totalorder %s56, %s57
      %p71 = scmp.eq.s32.totalorder %s23, 1
      %p72 = por %p70, %p71
      %p74 = scmp.ne.s32.totalorder %s57, %s73
      %p75 = scmp.eq.s32.totalorder %s23, 0
      %p76 = por %p74, %p75
      %s77 = ssub.s32 %s17, %s24
      %p78 = scmp.eq.s32.totalorder %s77, 0
      %s80 = sadd.s32 %s79, 1
      %s81 = scalar_select %p78, %s79, %s80
      %p84 = pneg %p78
      %p85 = scmp.eq.s32.totalorder %s17, 1
      %p86 = por %p84, %p85
      %p87 = scmp.ne.s32.totalorder %s79, %s82
      %p88 = scmp.eq.s32.totalorder %s17, 0
      %p89 = por %p87, %p88
      %p90 = scmp.ne.s32.totalorder %s79, %s82
      %p91 = scmp.eq.s32.totalorder %s22, 1
      %p92 = por %p90, %p91
      %p93 = scmp.ne.s32.totalorder %s82, %s83
      %p94 = scmp.eq.s32.totalorder %s22, 0
      %p95 = por %p93, %p94
      %p96 = scmp.ne.s32.totalorder %s82, %s83
      %p97 = scmp.eq.s32.totalorder %s23, 1
      %p98 = por %p96, %p97
      %p100 = scmp.ne.s32.totalorder %s83, %s99
      %p101 = scmp.eq.s32.totalorder %s23, 0
      %p102 = por %p100, %p101
      %p103 = scmp.le.s32.totalorder 1, %s17
      %p104 = scmp.lt.s32.totalorder %s17, 3
      %p105 = pnand %p103, %p104
      %p106 = pneg %p105
      // Predicated region
      $region9: #{tpu_custom_call.1} parent=5 // pred_check
        _
      $region10: #{tpu_custom_call.1} parent=5 // pred_check_branch
        %108 = sbr.rel (%p105) target = $region12
      $region11: #{tpu_custom_call.1} parent=5 // pred_region
        %s109 = ssub.s32 %s17, 1
      $region12: #{tpu_custom_call.1} parent=5 // pred_fallthru
        _
      %p110 = scmp.lt.s32.totalorder %s17, 2
      // Predicated region
      $region13: #{tpu_custom_call.1} parent=5 // pred_check
        %p111 = pneg %p110
      $region14: #{tpu_custom_call.1} parent=5 // pred_check_branch
        %113 = sbr.rel (%p111) target = $region16
      $region15: #{tpu_custom_call.1} parent=5 // pred_region
        // Predicated region
        $region17: #{tpu_custom_call.1} parent=15 // pred_check
          %p114 = pneg %p37
        $region18: #{tpu_custom_call.1} parent=15 // pred_check_branch
          %116 = sbr.rel (%p114) target = $region20
        $region19: #{tpu_custom_call.1} parent=15 // pred_region
          %s117 = sand.u32 %s27, 1
          %s118 = scalar_lea.sflag [#allocation3], %s117
          %s119 = sand.u32 %s27, 1
          %s120 = smul.addr %s119, 8
          %s121 = scalar_lea.vmem [#allocation2], %s120
          %s123 = ssub.s32 128, 128
          %124 = vsyncadd %s118, %s123
          %s125 = smul.addr %s17, 128
          %s126 = scalar_lea.hbm %s0, %s125
          %s128 = sshll.u32 %s121, 4
          %s129 = int_to_ptr.vmem [resolvable:$true] %s128
          %131 = dma.hbm_to_vmem [thread:$0]  %s126, 128, %s129, %s118
        $region20: #{tpu_custom_call.1} parent=15 // pred_fallthru
          _
        // Predicated region
        $region21: #{tpu_custom_call.1} parent=15 // pred_check
          %p132 = pneg %p63
        $region22: #{tpu_custom_call.1} parent=15 // pred_check_branch
          %134 = sbr.rel (%p132) target = $region24
        $region23: #{tpu_custom_call.1} parent=15 // pred_region
          %s135 = sand.u32 %s53, 1
          %s136 = scalar_lea.sflag [#allocation6], %s135
          %s137 = sand.u32 %s53, 1
          %s138 = smul.addr %s137, 8
          %s139 = scalar_lea.vmem [#allocation5], %s138
          %s141 = ssub.s32 128, 128
          %142 = vsyncadd %s136, %s141
          %s143 = smul.addr %s17, 128
          %s144 = scalar_lea.hbm %s1, %s143
          %s146 = sshll.u32 %s139, 4
          %s147 = int_to_ptr.vmem [resolvable:$true] %s146
          %149 = dma.hbm_to_vmem [thread:$0]  %s144, 128, %s147, %s136
        $region24: #{tpu_custom_call.1} parent=15 // pred_fallthru
          _
      $region16: #{tpu_custom_call.1} parent=5 // pred_fallthru
        _
      %p150 = scmp.le.s32.totalorder 1, %s17
      %p151 = scmp.lt.s32.totalorder %s17, 3
      %p152 = pnand %p150, %p151
      %p153 = pneg %p152
      // Predicated region
      $region25: #{tpu_custom_call.1} parent=5 // pred_check
        _
      $region26: #{tpu_custom_call.1} parent=5 // pred_check_branch
        %155 = sbr.rel (%p152) target = $region28
      $region27: #{tpu_custom_call.1} parent=5 // pred_region
        %s156 = ssub.s32 %s17, 1
        %s157 = sand.u32 %s30, 1
        %s158 = scalar_lea.sflag [#allocation3], %s157
        %s159 = sand.u32 %s30, 1
        %s160 = smul.addr %s159, 8
        %s161 = scalar_lea.vmem [#allocation2], %s160
        // Predicated region
        $region29: #{tpu_custom_call.1} parent=27 // pred_check
          %p162 = pneg %p43
        $region30: #{tpu_custom_call.1} parent=27 // pred_check_branch
          %164 = sbr.rel (%p162) target = $region32
        $region31: #{tpu_custom_call.1} parent=27 // pred_region
          %165 = dma.done %s158, 128
        $region32: #{tpu_custom_call.1} parent=27 // pred_fallthru
          _
        %s166 = sand.u32 %s56, 1
        %s167 = scalar_lea.sflag [#allocation6], %s166
        %s168 = sand.u32 %s56, 1
        %s169 = smul.addr %s168, 8
        %s170 = scalar_lea.vmem [#allocation5], %s169
        // Predicated region
        $region33: #{tpu_custom_call.1} parent=27 // pred_check
          %p171 = pneg %p69
        $region34: #{tpu_custom_call.1} parent=27 // pred_check_branch
          %173 = sbr.rel (%p171) target = $region36
        $region35: #{tpu_custom_call.1} parent=27 // pred_region
          %174 = dma.done %s167, 128
        $region36: #{tpu_custom_call.1} parent=27 // pred_fallthru
          _
        %s175 = sand.u32 %s30, 1
        %s176 = scalar_lea.sflag [#allocation3], %s175
        %s177 = sand.u32 %s30, 1
        %s178 = smul.addr %s177, 8
        %s179 = scalar_lea.vmem [#allocation2], %s178
        %p180 = pneg %p43
        %p181 = pneg %p40
        %s182 = sand.u32 %s56, 1
        %s183 = scalar_lea.sflag [#allocation6], %s182
        %s184 = sand.u32 %s56, 1
        %s185 = smul.addr %s184, 8
        %s186 = scalar_lea.vmem [#allocation5], %s185
        %p187 = pneg %p69
        %p188 = pneg %p66
        %p189 = pneg %p95
        %p190 = pneg %p92
        %s191 = sand.u32 %s82, 1
        %s192 = scalar_lea.sflag [#allocation4], %s191
        %s193 = sand.u32 %s82, 1
        %s194 = smul.addr %s193, 8
        %s195 = scalar_lea.vmem [#allocation7], %s194
        %v196 = vld [vmem:[%s161] sm:$0xff]
        %v197 = vld [vmem:[%s170] sm:$0xff]
        %198 = vmax.xlane.f32.xlu0 %v196
        %v199 = vpop.xlane.xlu0 %198
        %v200 = vsub.f32 %v196, %v199
        %v201 = vmul.f32 %v200, 0.25
        %202 = vmax.xlane.f32.xlu0 %v197
        %v203 = vpop.xlane.xlu0 %202
        %v204 = vsub.f32 %v197, %v203
        %v205 = vmul.f32 %v204, 0.25
        %v206 = vmul.f32 %v201, 1.442695
        %v207 = vpow.pop %v206
        %208 = vadd.xlane.f32.xlu0 %v207
        %v209 = vpop.xlane.xlu0 %208
        %v210 = vmul.f32 %v205, 1.442695
        %v211 = vpow.pop %v210
        %212 = vadd.xlane.f32.xlu0 %v211
        %v213 = vpop.xlane.xlu0 %212
        %v214 = vsub.f32 %v205, %v201
        %v215 = vmul.f32 %v211, %v214
        %216 = vadd.xlane.f32.xlu0 %v215
        %v217 = vpop.xlane.xlu0 %216
        %v218 = vrcp.pop %v213
        %v219 = vmul.f32 %v217, %v218
        %v220 = vlog2.pop %v209
        %v221 = vmul.f32 %v220, 0.6931472
        %v222 = vadd.f32 %v219, %v221
        %v223 = vlog2.pop %v213
        %v224 = vmul.f32 %v223, 0.6931472
        %v225 = vsub.f32 %v222, %v224
        %vm226 = vcmask 7168
        %v227 = vsel %vm226, %v225, 0.0
        %228 = vadd.xlane.f32.xlu0 %v227
        %v229 = vpop.xlane.xlu0 %228
        %v230 = vrot.slane %v229, 4
        %v231 = vadd.f32 %v229, %v230
        %v232 = vrot.slane %v231, 2
        %v233 = vadd.f32 %v231, %v232
        %v234 = vrot.slane %v233, 1
        %v235 = vadd.f32 %v233, %v234
        %s236 = vtos %v235
        %v237 = vstv %s236
        %238 = vst [vmem:[%s195] sm:$0xff] %v237
        %s239 = sand.u32 %s82, 1
        %s240 = scalar_lea.sflag [#allocation4], %s239
        %s241 = sand.u32 %s82, 1
        %s242 = smul.addr %s241, 8
        %s243 = scalar_lea.vmem [#allocation7], %s242
        // Predicated region
        $region37: #{tpu_custom_call.1} parent=27 // pred_check
          %p244 = pneg %p92
        $region38: #{tpu_custom_call.1} parent=27 // pred_check_branch
          %246 = sbr.rel (%p244) target = $region40
        $region39: #{tpu_custom_call.1} parent=27 // pred_region
          %s248 = ssub.s32 128, 128
          %249 = vsyncadd %s240, %s248
          %s250 = smul.addr %s22, 128
          %s251 = scalar_lea.hbm %s2, %s250
          %s253 = sshll.u32 %s243, 4
          %s254 = int_to_ptr.vmem [resolvable:$true] %s253
          %256 = dma.vmem_to_hbm [thread:$0]  %s254, 128, %s251, %s240
        $region40: #{tpu_custom_call.1} parent=27 // pred_fallthru
          _
      $region28: #{tpu_custom_call.1} parent=5 // pred_fallthru
        _
      %p257 = scmp.le.s32.totalorder 2, %s17
      // Predicated region
      $region41: #{tpu_custom_call.1} parent=5 // pred_check
        %p258 = pneg %p257
      $region42: #{tpu_custom_call.1} parent=5 // pred_check_branch
        %260 = sbr.rel (%p258) target = $region44
      $region43: #{tpu_custom_call.1} parent=5 // pred_region
        %s261 = ssub.s32 %s17, 2
        // Predicated region
        $region45: #{tpu_custom_call.1} parent=43 // pred_check
          %p262 = pneg %p98
        $region46: #{tpu_custom_call.1} parent=43 // pred_check_branch
          %264 = sbr.rel (%p262) target = $region48
        $region47: #{tpu_custom_call.1} parent=43 // pred_region
          %s265 = sand.u32 %s83, 1
          %s266 = scalar_lea.sflag [#allocation4], %s265
          %s267 = sand.u32 %s83, 1
          %s268 = smul.addr %s267, 8
          %s269 = scalar_lea.vmem [#allocation7], %s268
          %270 = dma.done %s266, 128
        $region48: #{tpu_custom_call.1} parent=43 // pred_fallthru
          _
      $region44: #{tpu_custom_call.1} parent=5 // pred_fallthru
        _
    $region6: #{tpu_custom_call.1} parent=1 // loop_footer
      %s21 = sadd.s32 1, %s17
    $region7: #{tpu_custom_call.1} parent=1 // loop_footer_branch
      %16 = sbr.rel target = $region3
    $region8: #{tpu_custom_call.1} parent=1 // loop_exit
      _
    %271 = vsyncpa [#allocation3], 1
    %s272 = scalar_lea.sflag [#allocation3], 1
    %273 = vsyncpa %s272, 1
    %274 = vsyncpa [#allocation6], 1
    %s275 = scalar_lea.sflag [#allocation6], 1
    %276 = vsyncpa %s275, 1
    %277 = vsyncpa [#allocation4], 1
    %s278 = scalar_lea.sflag [#allocation4], 1
    %279 = vsyncpa %s278, 1

</llo_original>
